<compile_context>
chip_gen: v6e
topology: v6e:2x2x1
jax: 0.10.0
libtpu: 0.0.40
codegen_flags: <defaults>
</compile_context>

<pallas_src>
import functools

import jax
import jax.numpy as jnp
from jax import lax
from jax.experimental import pallas as pl
from jax.experimental.pallas import tpu as pltpu

IN_DIM = 16
HIDDEN = 128
OUT_DIM = 12


def _round_up(x, m):
    return ((x + m - 1) // m) * m


def _mlp_kernel(x_ref, w1_ref, b1_ref, w2_ref, b2_ref, w3_ref, b3_ref, o_ref, *, chunk):
    """Fused Linear->ReLU->Linear->ReLU->Linear over CHUNK-row sub-tiles of the batch tile."""
    n_chunks = x_ref.shape[0] // chunk

    # Weights/biases are VMEM-resident across the whole grid (constant index_maps);
    # load them once per tile, outside the sub-chunk loop.
    w1 = w1_ref[...]
    w2 = w2_ref[...]
    w3 = w3_ref[...]
    b1 = b1_ref[...]
    b2 = b2_ref[...]
    b3 = b3_ref[...]

    def body(c, carry):
        r = pl.multiple_of(c * chunk, chunk)
        x = x_ref[pl.ds(r, chunk), :].astype(jnp.bfloat16)            # (chunk, 16) bf16

        h1 = jnp.dot(x, w1, preferred_element_type=jnp.float32) + b1   # f32 accumulate
        h1 = jnp.maximum(h1, 0.0).astype(jnp.bfloat16)                 # f32 ReLU -> bf16 operand

        h2 = jnp.dot(h1, w2, preferred_element_type=jnp.float32) + b2
        h2 = jnp.maximum(h2, 0.0).astype(jnp.bfloat16)

        out = jnp.dot(h2, w3, preferred_element_type=jnp.float32) + b3  # (chunk, 12) f32
        o_ref[pl.ds(r, chunk), :] = out.astype(o_ref.dtype)
        return carry

    lax.fori_loop(0, n_chunks, body, 0, unroll=True)


def prepare_params(params):
    """One-time device-side param prep (hoisted out of the per-call hot path)."""
    return {
        "w1": params["w1"].astype(jnp.bfloat16),
        "w2": params["w2"].astype(jnp.bfloat16),
        "w3": params["w3"].astype(jnp.bfloat16),
        "b1": params["b1"].astype(jnp.float32).reshape(1, HIDDEN),
        "b2": params["b2"].astype(jnp.float32).reshape(1, HIDDEN),
        "b3": params["b3"].astype(jnp.float32).reshape(1, OUT_DIM),
    }


def _pick_tiles(B, tb, chunk):
    """Pick (TB, chunk, B_pad). TB is a multiple of chunk (or the whole tiny batch)."""
    B16 = _round_up(B, 16)
    if B16 <= chunk:
        # Tiny batch: one tile, one chunk.
        return B16, B16, B16
    # Aim for >=2 grid steps (v7x has 2 TensorCores) but cap tile size at `tb`.
    half = _round_up((B16 + 1) // 2, chunk)
    TB = min(_round_up(tb, chunk), half)
    B_pad = _round_up(B16, TB)
    return TB, chunk, B_pad


def drone_dynamics_forward(xu, dev_params, *, tb=2048, chunk=256):
    """xu: (B, 16) float32; dev_params: output of prepare_params(). Returns (B, 12) float32."""
    B = xu.shape[0]
    TB, CH, B_pad = _pick_tiles(B, tb, chunk)

    x = xu.astype(jnp.float32)
    if B_pad != B:
        x = jnp.pad(x, ((0, B_pad - B), (0, 0)))

    kernel = functools.partial(_mlp_kernel, chunk=CH)

    out = pl.pallas_call(
        kernel,
        out_shape=jax.ShapeDtypeStruct((B_pad, OUT_DIM), jnp.float32),
        grid_spec=pl.GridSpec(
            grid=(B_pad // TB,),
            in_specs=[
                pl.BlockSpec((TB, IN_DIM), lambda i: (i, 0)),        # x tile (f32, cast in-kernel)
                pl.BlockSpec((IN_DIM, HIDDEN), lambda i: (0, 0)),    # W1 (resident)
                pl.BlockSpec((1, HIDDEN), lambda i: (0, 0)),         # b1
                pl.BlockSpec((HIDDEN, HIDDEN), lambda i: (0, 0)),    # W2
                pl.BlockSpec((1, HIDDEN), lambda i: (0, 0)),         # b2
                pl.BlockSpec((HIDDEN, OUT_DIM), lambda i: (0, 0)),   # W3 (12 cols, unpadded)
                pl.BlockSpec((1, OUT_DIM), lambda i: (0, 0)),        # b3
            ],
            out_specs=pl.BlockSpec((TB, OUT_DIM), lambda i: (i, 0)),  # (TB, 12) f32
        ),
        compiler_params=pltpu.CompilerParams(
            dimension_semantics=("parallel",),  # batch axis shardable across TCs (v7x)
        ),
    )(x, dev_params["w1"], dev_params["b1"], dev_params["w2"], dev_params["b2"],
      dev_params["w3"], dev_params["b3"])

    return out[:B, :]


def init_params(key):
    """Deterministic init matching nn.Linear default: U(-1/sqrt(fan_in), 1/sqrt(fan_in))."""
    ks = jax.random.split(key, 6)

    def linear(kw, kb, fan_in, fan_out):
        bound = 1.0 / jnp.sqrt(jnp.float32(fan_in))
        w = jax.random.uniform(kw, (fan_in, fan_out), jnp.float32, -bound, bound)
        b = jax.random.uniform(kb, (1, fan_out), jnp.float32, -bound, bound)
        return w, b

    w1, b1 = linear(ks[0], ks[1], IN_DIM, HIDDEN)
    w2, b2 = linear(ks[2], ks[3], HIDDEN, HIDDEN)
    w3, b3 = linear(ks[4], ks[5], HIDDEN, OUT_DIM)
    return {"w1": w1, "b1": b1, "w2": w2, "b2": b2, "w3": w3, "b3": b3}


if __name__ == "__main__":
    key = jax.random.PRNGKey(0)
    k_param, k_x = jax.random.split(key)

    params = init_params(k_param)
    dev_params = prepare_params(params)  # one-time weight prep (not in the hot path)

    # Small B here is just a correctness test; batch many rollout steps per call in
    # real use (B >= 2048) to amortize launch overhead and fill both v7x TCs.
    B = 8
    xu = jax.random.normal(k_x, (B, IN_DIM), dtype=jnp.float32)

    out = jax.block_until_ready(drone_dynamics_forward(xu, dev_params))

    # Pure-JAX reference with the same bf16 operand rounding (f32 accumulation).
    def rb(a):
        return a.astype(jnp.bfloat16).astype(jnp.float32)

    h1 = jnp.maximum(rb(xu) @ rb(params["w1"]) + params["b1"], 0.0)
    h2 = jnp.maximum(rb(h1) @ rb(params["w2"]) + params["b2"], 0.0)
    ref = rb(h2) @ rb(params["w3"]) + params["b3"]

    assert out.shape == (B, OUT_DIM)
    assert jnp.allclose(out, ref, atol=2e-2, rtol=2e-2)

    print("KERNEL_OK")
</pallas_src>

<mosaic_0001>
module attributes {stable_mosaic.version = 11 : i64} {
  func.func @_mlp_kernel(%arg0: i32, %arg1: memref<16x16xf32, #tpu.memory_space<vmem>>, %arg2: memref<16x128xbf16, #tpu.memory_space<vmem>>, %arg3: memref<1x128xf32, #tpu.memory_space<vmem>>, %arg4: memref<128x128xbf16, #tpu.memory_space<vmem>>, %arg5: memref<1x128xf32, #tpu.memory_space<vmem>>, %arg6: memref<128x12xbf16, #tpu.memory_space<vmem>>, %arg7: memref<1x12xf32, #tpu.memory_space<vmem>>, %arg8: memref<16x12xf32, #tpu.memory_space<vmem>>) attributes {dimension_semantics = [#tpu.dimension_semantics<parallel>], iteration_bounds = array<i64: 1>, scalar_prefetch = 0 : i64, scratch_operands = 0 : i64, tpu.core_type = #tpu.core_type<tc>, window_params = [{transform_indices = @transform_0, window_bounds = array<i64: 16, 16>}, {pipeline_mode = #tpu.pipeline_mode<synchronous>, transform_indices = @transform_1, window_bounds = array<i64: 16, 128>}, {pipeline_mode = #tpu.pipeline_mode<synchronous>, transform_indices = @transform_2, window_bounds = array<i64: 1, 128>}, {pipeline_mode = #tpu.pipeline_mode<synchronous>, transform_indices = @transform_3, window_bounds = array<i64: 128, 128>}, {pipeline_mode = #tpu.pipeline_mode<synchronous>, transform_indices = @transform_4, window_bounds = array<i64: 1, 128>}, {pipeline_mode = #tpu.pipeline_mode<synchronous>, transform_indices = @transform_5, window_bounds = array<i64: 128, 12>}, {pipeline_mode = #tpu.pipeline_mode<synchronous>, transform_indices = @transform_6, window_bounds = array<i64: 1, 12>}, {transform_indices = @transform_7, window_bounds = array<i64: 16, 12>}]} {
    %c0 = arith.constant 0 : index
    %c0_0 = arith.constant 0 : index
    %0 = vector.load %arg2[%c0, %c0_0] : memref<16x128xbf16, #tpu.memory_space<vmem>>, vector<16x128xbf16>
    %c0_1 = arith.constant 0 : index
    %c0_2 = arith.constant 0 : index
    %1 = vector.load %arg4[%c0_1, %c0_2] : memref<128x128xbf16, #tpu.memory_space<vmem>>, vector<128x128xbf16>
    %c0_3 = arith.constant 0 : index
    %c0_4 = arith.constant 0 : index
    %2 = vector.load %arg6[%c0_3, %c0_4] : memref<128x12xbf16, #tpu.memory_space<vmem>>, vector<128x12xbf16>
    %c0_5 = arith.constant 0 : index
    %c0_6 = arith.constant 0 : index
    %3 = vector.load %arg3[%c0_5, %c0_6] : memref<1x128xf32, #tpu.memory_space<vmem>>, vector<1x128xf32>
    %c0_7 = arith.constant 0 : index
    %c0_8 = arith.constant 0 : index
    %4 = vector.load %arg5[%c0_7, %c0_8] : memref<1x128xf32, #tpu.memory_space<vmem>>, vector<1x128xf32>
    %c0_9 = arith.constant 0 : index
    %c0_10 = arith.constant 0 : index
    %5 = vector.load %arg7[%c0_9, %c0_10] : memref<1x12xf32, #tpu.memory_space<vmem>>, vector<1x12xf32>
    %c0_i32 = arith.constant 0 : i32
    %c16_i32 = arith.constant 16 : i32
    %6 = arith.muli %c0_i32, %c16_i32 : i32
    %7 = tpu.assume_multiple %6, 16 : i32
    %8 = arith.index_cast %7 : i32 to index
    %c0_11 = arith.constant 0 : index
    %9 = vector.load %arg1[%8, %c0_11] : memref<16x16xf32, #tpu.memory_space<vmem>>, vector<16x16xf32>
    %10 = arith.truncf %9 : vector<16x16xf32> to vector<16x16xbf16>
    %cst = arith.constant dense<0.000000e+00> : vector<16x128xf32>
    %11 = tpu.matmul %10, %0, %cst {dimension_numbers = #tpu.dot_dimension_numbers<[1], [0], [0], [1], [0, 0, 1, 1], [], []>} : vector<16x16xbf16>, vector<16x128xbf16>, vector<16x128xf32> -> vector<16x128xf32>
    %12 = vector.broadcast %3 : vector<1x128xf32> to vector<16x128xf32>
    %13 = arith.addf %11, %12 : vector<16x128xf32>
    %cst_12 = arith.constant 0.000000e+00 : f32
    %14 = vector.broadcast %cst_12 : f32 to vector<16x128xf32>
    %15 = arith.maximumf %13, %14 : vector<16x128xf32>
    %16 = arith.truncf %15 : vector<16x128xf32> to vector<16x128xbf16>
    %cst_13 = arith.constant dense<0.000000e+00> : vector<16x128xf32>
    %17 = tpu.matmul %16, %1, %cst_13 {dimension_numbers = #tpu.dot_dimension_numbers<[1], [0], [0], [1], [0, 0, 1, 1], [], []>} : vector<16x128xbf16>, vector<128x128xbf16>, vector<16x128xf32> -> vector<16x128xf32>
    %18 = vector.broadcast %4 : vector<1x128xf32> to vector<16x128xf32>
    %19 = arith.addf %17, %18 : vector<16x128xf32>
    %cst_14 = arith.constant 0.000000e+00 : f32
    %20 = vector.broadcast %cst_14 : f32 to vector<16x128xf32>
    %21 = arith.maximumf %19, %20 : vector<16x128xf32>
    %22 = arith.truncf %21 : vector<16x128xf32> to vector<16x128xbf16>
    %cst_15 = arith.constant dense<0.000000e+00> : vector<16x12xf32>
    %23 = tpu.matmul %22, %2, %cst_15 {dimension_numbers = #tpu.dot_dimension_numbers<[1], [0], [0], [1], [0, 0, 1, 1], [], []>} : vector<16x128xbf16>, vector<128x12xbf16>, vector<16x12xf32> -> vector<16x12xf32>
    %24 = vector.broadcast %5 : vector<1x12xf32> to vector<16x12xf32>
    %25 = arith.addf %23, %24 : vector<16x12xf32>
    %26 = arith.index_cast %7 : i32 to index
    %c0_16 = arith.constant 0 : index
    %27 = vector.load %arg8[%26, %c0_16] : memref<16x12xf32, #tpu.memory_space<vmem>>, vector<16x12xf32>
    tpu.vector_store %arg8[%26, %c0_16], %25 {strides = array<i32>} : memref<16x12xf32, #tpu.memory_space<vmem>>, vector<16x12xf32>,
    %c1_i32 = arith.constant 1 : i32
    return
  }
  func.func @transform_0(%arg0: i32) -> (i32, i32) {
    %c0_i32 = arith.constant 0 : i32
    %c0_i32_0 = arith.constant 0 : i32
    return %arg0, %c0_i32 : i32, i32
  }
  func.func @transform_1(%arg0: i32) -> (i32, i32) {
    %c0_i32 = arith.constant 0 : i32
    %c0_i32_0 = arith.constant 0 : i32
    %c0_i32_1 = arith.constant 0 : i32
    return %c0_i32, %c0_i32_0 : i32, i32
  }
  func.func @transform_2(%arg0: i32) -> (i32, i32) {
    %c0_i32 = arith.constant 0 : i32
    %c0_i32_0 = arith.constant 0 : i32
    %c0_i32_1 = arith.constant 0 : i32
    return %c0_i32, %c0_i32_0 : i32, i32
  }
  func.func @transform_3(%arg0: i32) -> (i32, i32) {
    %c0_i32 = arith.constant 0 : i32
    %c0_i32_0 = arith.constant 0 : i32
    %c0_i32_1 = arith.constant 0 : i32
    return %c0_i32, %c0_i32_0 : i32, i32
  }
  func.func @transform_4(%arg0: i32) -> (i32, i32) {
    %c0_i32 = arith.constant 0 : i32
    %c0_i32_0 = arith.constant 0 : i32
    %c0_i32_1 = arith.constant 0 : i32
    return %c0_i32, %c0_i32_0 : i32, i32
  }
  func.func @transform_5(%arg0: i32) -> (i32, i32) {
    %c0_i32 = arith.constant 0 : i32
    %c0_i32_0 = arith.constant 0 : i32
    %c0_i32_1 = arith.constant 0 : i32
    return %c0_i32, %c0_i32_0 : i32, i32
  }
  func.func @transform_6(%arg0: i32) -> (i32, i32) {
    %c0_i32 = arith.constant 0 : i32
    %c0_i32_0 = arith.constant 0 : i32
    %c0_i32_1 = arith.constant 0 : i32
    return %c0_i32, %c0_i32_0 : i32, i32
  }
  func.func @transform_7(%arg0: i32) -> (i32, i32) {
    %c0_i32 = arith.constant 0 : i32
    %c0_i32_0 = arith.constant 0 : i32
    return %arg0, %c0_i32 : i32, i32
  }
}

</mosaic_0001>

<llo_original>
// kernel: tpu_custom_call.1
$region0: #{tpu_custom_call.1}
  #allocation0 [shape = 'u32[]', space=smem, size = 0x4, offset = 0x4, fixed_abs, tag = 'smem constant byte address 0x4 - core index']
  #allocation1 [shape = 'u32[144,128]{1,0:T(1,128)}', space=vmem, size = 0x12000, scoped, tag = 'internal scratch']
  %s0 = inlined_call_operand.hbm [shape: f32[16,16], index: 0, kind: input, shape index: {}]
  %s1 = inlined_call_operand.vmem [shape: bf16[16,128], index: 1, kind: input, shape index: {}]
  %s2 = inlined_call_operand.vmem [shape: f32[1,128], index: 2, kind: input, shape index: {}]
  %s3 = inlined_call_operand.vmem [shape: bf16[128,128], index: 3, kind: input, shape index: {}]
  %s4 = inlined_call_operand.hbm [shape: f32[1,128], index: 4, kind: input, shape index: {}]
  %s5 = inlined_call_operand.vmem [shape: bf16[128,12], index: 5, kind: input, shape index: {}]
  %s6 = inlined_call_operand.vmem [shape: f32[1,12], index: 6, kind: input, shape index: {}]
  %s7 = inlined_call_operand.hbm [shape: f32[16,12], index: 7, kind: output, shape index: {}]
  %s8 = sld [smem:[#allocation0]]
  $region46: #{tpu_custom_call.1} parent=0
    _
  %s10 = ssub.s32 1, %s8
  %s11 = scalar_select 0, %s10, %s8
  $region1: #{tpu_custom_call.1} parent=0
    #allocation2 [shape = 'u8[8192]{0}', space=vmem, size = 0x2000, scoped, tag = 'input window, operand 0, single buffered']
    #allocation3 [shape = 's32[1]{0}', space=sflag, size = 0x4, scoped, tag = 'scoped memory for tpu_custom_call.1']
    #allocation4 [shape = 's32[1]{0}', space=sflag, size = 0x4, scoped, tag = 'scoped memory for tpu_custom_call.1']
    #allocation5 [shape = 'u8[512]{0}', space=vmem, size = 0x400, scoped, tag = 'input window, operand 4, single buffered']
    #allocation6 [shape = 's32[1]{0}', space=sflag, size = 0x4, scoped, tag = 'scoped memory for tpu_custom_call.1']
    #allocation7 [shape = 'u8[8192]{0}', space=vmem, size = 0x2000, scoped, tag = 'output window, operand 0, single buffered']
    %12 = vsyncpa [#allocation3], 0
    %13 = vsyncpa [#allocation6], 0
    %14 = vsyncpa [#allocation4], 0
    // Predicated region
    $region2: #{tpu_custom_call.1} parent=1 // pred_check
      _
    $region3: #{tpu_custom_call.1} parent=1 // pred_check_branch
      %16 = sbr.rel (0) target = $region5
    $region4: #{tpu_custom_call.1} parent=1 // pred_region
      %s18 = ssub.s32 256, 256
      %19 = vsyncadd [#allocation3], %s18
      %s20 = sshll.u32 [#allocation2], 4
      %s21 = int_to_ptr.vmem [resolvable:$true] %s20
      %26 = dma.hbm_to_vmem [thread:$0]  %s0, 256, %s21, [#allocation3], 128, 128, 8
    $region5: #{tpu_custom_call.1} parent=1 // pred_fallthru
      _
    // Predicated region
    $region6: #{tpu_custom_call.1} parent=1 // pred_check
      _
    $region7: #{tpu_custom_call.1} parent=1 // pred_check_branch
      %28 = sbr.rel (0) target = $region9
    $region8: #{tpu_custom_call.1} parent=1 // pred_region
      _
    $region9: #{tpu_custom_call.1} parent=1 // pred_fallthru
      _
    // Predicated region
    $region10: #{tpu_custom_call.1} parent=1 // pred_check
      _
    $region11: #{tpu_custom_call.1} parent=1 // pred_check_branch
      %30 = sbr.rel (0) target = $region13
    $region12: #{tpu_custom_call.1} parent=1 // pred_region
      _
    $region13: #{tpu_custom_call.1} parent=1 // pred_fallthru
      _
    // Predicated region
    $region14: #{tpu_custom_call.1} parent=1 // pred_check
      _
    $region15: #{tpu_custom_call.1} parent=1 // pred_check_branch
      %32 = sbr.rel (0) target = $region17
    $region16: #{tpu_custom_call.1} parent=1 // pred_region
      _
    $region17: #{tpu_custom_call.1} parent=1 // pred_fallthru
      _
    // Predicated region
    $region18: #{tpu_custom_call.1} parent=1 // pred_check
      _
    $region19: #{tpu_custom_call.1} parent=1 // pred_check_branch
      %34 = sbr.rel (0) target = $region21
    $region20: #{tpu_custom_call.1} parent=1 // pred_region
      %s36 = ssub.s32 16, 16
      %37 = vsyncadd [#allocation6], %s36
      %s39 = sshll.u32 [#allocation5], 4
      %s40 = int_to_ptr.vmem [resolvable:$true] %s39
      %42 = dma.hbm_to_vmem [thread:$0]  %s4, 16, %s40, [#allocation6]
    $region21: #{tpu_custom_call.1} parent=1 // pred_fallthru
      _
    // Predicated region
    $region22: #{tpu_custom_call.1} parent=1 // pred_check
      _
    $region23: #{tpu_custom_call.1} parent=1 // pred_check_branch
      %44 = sbr.rel (0) target = $region25
    $region24: #{tpu_custom_call.1} parent=1 // pred_region
      _
    $region25: #{tpu_custom_call.1} parent=1 // pred_fallthru
      _
    // Predicated region
    $region26: #{tpu_custom_call.1} parent=1 // pred_check
      _
    $region27: #{tpu_custom_call.1} parent=1 // pred_check_branch
      %46 = sbr.rel (0) target = $region29
    $region28: #{tpu_custom_call.1} parent=1 // pred_region
      _
    $region29: #{tpu_custom_call.1} parent=1 // pred_fallthru
      _
    // Predicated region
    $region30: #{tpu_custom_call.1} parent=1 // pred_check
      _
    $region31: #{tpu_custom_call.1} parent=1 // pred_check_branch
      %48 = sbr.rel (0) target = $region33
    $region32: #{tpu_custom_call.1} parent=1 // pred_region
      %49 = dma.done [#allocation3], 256
    $region33: #{tpu_custom_call.1} parent=1 // pred_fallthru
      _
    // Predicated region
    $region34: #{tpu_custom_call.1} parent=1 // pred_check
      _
    $region35: #{tpu_custom_call.1} parent=1 // pred_check_branch
      %51 = sbr.rel (0) target = $region37
    $region36: #{tpu_custom_call.1} parent=1 // pred_region
      %52 = dma.done [#allocation6], 16
    $region37: #{tpu_custom_call.1} parent=1 // pred_fallthru
      _
    %v54 = vld [vmem:[%s1] sm:$0xf]
    %v55 = vld [vmem:[%s1 + $0x4] sm:$0xf]
    %v56 = vld [vmem:[%s3] sm:$0xf]
    %v57 = vld [vmem:[%s3 + $0x4] sm:$0xf]
    %v58 = vld [vmem:[%s3 + $0x8] sm:$0xf]
    %v59 = vld [vmem:[%s3 + $0xc] sm:$0xf]
    %v60 = vld [vmem:[%s3 + $0x10] sm:$0xf]
    %v61 = vld [vmem:[%s3 + $0x14] sm:$0xf]
    %v62 = vld [vmem:[%s3 + $0x18] sm:$0xf]
    %v63 = vld [vmem:[%s3 + $0x1c] sm:$0xf]
    %v64 = vld [vmem:[%s3 + $0x20] sm:$0xf]
    %v65 = vld [vmem:[%s3 + $0x24] sm:$0xf]
    %v66 = vld [vmem:[%s3 + $0x28] sm:$0xf]
    %v67 = vld [vmem:[%s3 + $0x2c] sm:$0xf]
    %v68 = vld [vmem:[%s3 + $0x30] sm:$0xf]
    %v69 = vld [vmem:[%s3 + $0x34] sm:$0xf]
    %v70 = vld [vmem:[%s3 + $0x38] sm:$0xf]
    %v71 = vld [vmem:[%s3 + $0x3c] sm:$0xf]
    %v72 = vld [vmem:[%s5] sm:$0xf]
    %v73 = vld [vmem:[%s5 + $0x4] sm:$0xf]
    %v74 = vld [vmem:[%s5 + $0x8] sm:$0xf]
    %v75 = vld [vmem:[%s5 + $0xc] sm:$0xf]
    %v76 = vld [vmem:[%s5 + $0x10] sm:$0xf]
    %v77 = vld [vmem:[%s5 + $0x14] sm:$0xf]
    %v78 = vld [vmem:[%s5 + $0x18] sm:$0xf]
    %v79 = vld [vmem:[%s5 + $0x1c] sm:$0xf]
    %v80 = vld [vmem:[%s5 + $0x20] sm:$0xf]
    %v81 = vld [vmem:[%s5 + $0x24] sm:$0xf]
    %v82 = vld [vmem:[%s5 + $0x28] sm:$0xf]
    %v83 = vld [vmem:[%s5 + $0x2c] sm:$0xf]
    %v84 = vld [vmem:[%s5 + $0x30] sm:$0xf]
    %v85 = vld [vmem:[%s5 + $0x34] sm:$0xf]
    %v86 = vld [vmem:[%s5 + $0x38] sm:$0xf]
    %v87 = vld [vmem:[%s5 + $0x3c] sm:$0xf]
    %v88 = vld [vmem:[%s2] sm:$0x1]
    %v89 = vld [vmem:[#allocation5] sm:$0x1]
    %v90 = vld [vmem:[%s6] sm:$0x1]
    %v91 = vld [vmem:[#allocation2] sm:$0xff]
    %v92 = vld [vmem:[#allocation2 + $0x8] sm:$0xff]
    %v93 = vpack.c.bf16 %v92, %v91
    %v95 = vlaneseq
    %v96 = vshrl.u32 %v95, 7
    %v97 = vsub.s32 0, %v96
    %v98 = vrot.slane %v88, %v97
    %v102 = vunpack.c.l.b16 %v54
    %v103 = vunpack.c.l.b16 %v55
    %v104 = vpack.c.b16 %v103, %v102
    %vm106 = vcmask 130048
    %v108 = vsel %vm106, %v93, 0
    %110 = vmatprep.subr.bf16.mxu0 0
    %111 = vmatpush1.bf16.msra.mxu0 0
    %112 = vmatprep.subr.bf16.mxu0 0
    %113 = vmatpush1.bf16.msra.mxu0 0
    %114 = vmatprep.subr.bf16.mxu0 0
    %115 = vmatpush1.bf16.msra.mxu0 0
    %116 = vmatprep.subr.bf16.mxu0 0
    %117 = vmatpush1.bf16.msra.mxu0 0
    %118 = vmatprep.subr.bf16.mxu0 0
    %119 = vmatpush1.bf16.msra.mxu0 0
    %120 = vmatprep.subr.bf16.mxu0 0
    %121 = vmatpush1.bf16.msra.mxu0 0
    %122 = vmatprep.subr.bf16.mxu0 0
    %123 = vmatpush1.bf16.msra.mxu0 0
    %124 = vmatprep.subr.bf16.mxu0 0
    %125 = vmatpush1.bf16.msra.mxu0 %v104
    %126 = vmatprep.subr.bf16.mxu0 0
    %127 = vmatpush2.bf16.msra.mxu0 0
    %128 = vmatprep.subr.bf16.mxu0 0
    %129 = vmatpush2.bf16.msra.mxu0 0
    %130 = vmatprep.subr.bf16.mxu0 0
    %131 = vmatpush2.bf16.msra.mxu0 0
    %132 = vmatprep.subr.bf16.mxu0 0
    %133 = vmatpush2.bf16.msra.mxu0 0
    %134 = vmatprep.subr.bf16.mxu0 0
    %135 = vmatpush2.bf16.msra.mxu0 0
    %136 = vmatprep.subr.bf16.mxu0 0
    %137 = vmatpush2.bf16.msra.mxu0 0
    %138 = vmatprep.subr.bf16.mxu0 0
    %139 = vmatpush2.bf16.msra.mxu0 0
    %140 = vmatprep.subr.bf16.mxu0 0
    %141 = vmatpush2.bf16.msra.mxu0 0
    %142 = vmatprep.mubr.bf16.mxu0 0
    %143 = vmatmul.mubr.bf16.gmra.mxu0 %v108
    %v144 = vpop.f32.mrf.mxu0
    %v145 = vadd.f32 %v98, %v144
    %v146 = vpop.f32.mrf.mxu0
    %v147 = vpop.f32.mrf.mxu0
    %v148 = vadd.f32 %v98, %v147
    %v149 = vpop.f32.mrf.mxu0
    %150 = vdwg.mxu0
    %v151 = vmax.f32 %v145, 0.0
    %v152 = vmax.f32 %v148, 0.0
    %v153 = vpack.c.bf16 %v152, %v151
    %v155 = vlaneseq
    %v156 = vshrl.u32 %v155, 7
    %v157 = vsub.s32 0, %v156
    %v158 = vrot.slane %v89, %v157
    %v176 = vunpack.c.l.b16 %v56
    %v177 = vunpack.c.l.b16 %v57
    %v178 = vunpack.c.l.b16 %v58
    %v179 = vunpack.c.l.b16 %v59
    %v180 = vunpack.c.l.b16 %v60
    %v181 = vunpack.c.l.b16 %v61
    %v182 = vunpack.c.l.b16 %v62
    %v183 = vunpack.c.l.b16 %v63
    %v184 = vunpack.c.l.b16 %v64
    %v185 = vunpack.c.l.b16 %v65
    %v186 = vunpack.c.l.b16 %v66
    %v187 = vunpack.c.l.b16 %v67
    %v188 = vunpack.c.l.b16 %v68
    %v189 = vunpack.c.l.b16 %v69
    %v190 = vunpack.c.l.b16 %v70
    %v191 = vunpack.c.l.b16 %v71
    %v192 = vpack.c.b16 %v177, %v176
    %v193 = vpack.c.b16 %v179, %v178
    %v194 = vpack.c.b16 %v181, %v180
    %v195 = vpack.c.b16 %v183, %v182
    %v196 = vpack.c.b16 %v185, %v184
    %v197 = vpack.c.b16 %v187, %v186
    %v198 = vpack.c.b16 %v189, %v188
    %v199 = vpack.c.b16 %v191, %v190
    %208 = vmatprep.subr.bf16.mxu0 0
    %209 = vmatpush1.bf16.msra.mxu0 %v199
    %210 = vmatprep.subr.bf16.mxu0 0
    %211 = vmatpush1.bf16.msra.mxu0 %v198
    %212 = vmatprep.subr.bf16.mxu0 0
    %213 = vmatpush1.bf16.msra.mxu0 %v197
    %214 = vmatprep.subr.bf16.mxu0 0
    %215 = vmatpush1.bf16.msra.mxu0 %v196
    %216 = vmatprep.subr.bf16.mxu0 0
    %217 = vmatpush1.bf16.msra.mxu0 %v195
    %218 = vmatprep.subr.bf16.mxu0 0
    %219 = vmatpush1.bf16.msra.mxu0 %v194
    %220 = vmatprep.subr.bf16.mxu0 0
    %221 = vmatpush1.bf16.msra.mxu0 %v193
    %222 = vmatprep.subr.bf16.mxu0 0
    %223 = vmatpush1.bf16.msra.mxu0 %v192
    %224 = vmatprep.subr.bf16.mxu0 0
    %225 = vmatpush2.bf16.msra.mxu0 0
    %226 = vmatprep.subr.bf16.mxu0 0
    %227 = vmatpush2.bf16.msra.mxu0 0
    %228 = vmatprep.subr.bf16.mxu0 0
    %229 = vmatpush2.bf16.msra.mxu0 0
    %230 = vmatprep.subr.bf16.mxu0 0
    %231 = vmatpush2.bf16.msra.mxu0 0
    %232 = vmatprep.subr.bf16.mxu0 0
    %233 = vmatpush2.bf16.msra.mxu0 0
    %234 = vmatprep.subr.bf16.mxu0 0
    %235 = vmatpush2.bf16.msra.mxu0 0
    %236 = vmatprep.subr.bf16.mxu0 0
    %237 = vmatpush2.bf16.msra.mxu0 0
    %238 = vmatprep.subr.bf16.mxu0 0
    %239 = vmatpush2.bf16.msra.mxu0 0
    %240 = vmatprep.mubr.bf16.mxu0 0
    %241 = vmatmul.mubr.bf16.gmra.mxu0 %v153
    %v242 = vpop.f32.mrf.mxu0
    %v243 = vadd.f32 %v158, %v242
    %v244 = vpop.f32.mrf.mxu0
    %v245 = vpop.f32.mrf.mxu0
    %v246 = vadd.f32 %v158, %v245
    %v247 = vpop.f32.mrf.mxu0
    %248 = vdwg.mxu0
    %v249 = vmax.f32 %v243, 0.0
    %v250 = vmax.f32 %v246, 0.0
    %v251 = vpack.c.bf16 %v250, %v249
    %v253 = vlaneseq
    %v254 = vshrl.u32 %v253, 7
    %v255 = vsub.s32 0, %v254
    %v256 = vrot.slane %v90, %v255
    %v274 = vunpack.c.l.b16 %v72
    %v275 = vunpack.c.l.b16 %v73
    %v276 = vunpack.c.l.b16 %v74
    %v277 = vunpack.c.l.b16 %v75
    %v278 = vunpack.c.l.b16 %v76
    %v279 = vunpack.c.l.b16 %v77
    %v280 = vunpack.c.l.b16 %v78
    %v281 = vunpack.c.l.b16 %v79
    %v282 = vunpack.c.l.b16 %v80
    %v283 = vunpack.c.l.b16 %v81
    %v284 = vunpack.c.l.b16 %v82
    %v285 = vunpack.c.l.b16 %v83
    %v286 = vunpack.c.l.b16 %v84
    %v287 = vunpack.c.l.b16 %v85
    %v288 = vunpack.c.l.b16 %v86
    %v289 = vunpack.c.l.b16 %v87
    %v290 = vpack.c.b16 %v275, %v274
    %v291 = vpack.c.b16 %v277, %v276
    %v292 = vpack.c.b16 %v279, %v278
    %v293 = vpack.c.b16 %v281, %v280
    %v294 = vpack.c.b16 %v283, %v282
    %v295 = vpack.c.b16 %v285, %v284
    %v296 = vpack.c.b16 %v287, %v286
    %v297 = vpack.c.b16 %v289, %v288
    %306 = vmatprep.subr.bf16.mxu0 0
    %307 = vmatpush1.bf16.msra.mxu0 %v297
    %308 = vmatprep.subr.bf16.mxu0 0
    %309 = vmatpush1.bf16.msra.mxu0 %v296
    %310 = vmatprep.subr.bf16.mxu0 0
    %311 = vmatpush1.bf16.msra.mxu0 %v295
    %312 = vmatprep.subr.bf16.mxu0 0
    %313 = vmatpush1.bf16.msra.mxu0 %v294
    %314 = vmatprep.subr.bf16.mxu0 0
    %315 = vmatpush1.bf16.msra.mxu0 %v293
    %316 = vmatprep.subr.bf16.mxu0 0
    %317 = vmatpush1.bf16.msra.mxu0 %v292
    %318 = vmatprep.subr.bf16.mxu0 0
    %319 = vmatpush1.bf16.msra.mxu0 %v291
    %320 = vmatprep.subr.bf16.mxu0 0
    %321 = vmatpush1.bf16.msra.mxu0 %v290
    %322 = vmatprep.subr.bf16.mxu0 0
    %323 = vmatpush2.bf16.msra.mxu0 0
    %324 = vmatprep.subr.bf16.mxu0 0
    %325 = vmatpush2.bf16.msra.mxu0 0
    %326 = vmatprep.subr.bf16.mxu0 0
    %327 = vmatpush2.bf16.msra.mxu0 0
    %328 = vmatprep.subr.bf16.mxu0 0
    %329 = vmatpush2.bf16.msra.mxu0 0
    %330 = vmatprep.subr.bf16.mxu0 0
    %331 = vmatpush2.bf16.msra.mxu0 0
    %332 = vmatprep.subr.bf16.mxu0 0
    %333 = vmatpush2.bf16.msra.mxu0 0
    %334 = vmatprep.subr.bf16.mxu0 0
    %335 = vmatpush2.bf16.msra.mxu0 0
    %336 = vmatprep.subr.bf16.mxu0 0
    %337 = vmatpush2.bf16.msra.mxu0 0
    %338 = vmatprep.mubr.bf16.mxu0 0
    %339 = vmatmul.mubr.bf16.gmra.mxu0 %v251
    %v340 = vpop.f32.mrf.mxu0
    %v341 = vadd.f32 %v256, %v340
    %v342 = vpop.f32.mrf.mxu0
    %v343 = vpop.f32.mrf.mxu0
    %v344 = vadd.f32 %v256, %v343
    %v345 = vpop.f32.mrf.mxu0
    %346 = vdwg.mxu0
    %vm347 = vcmask 97280
    %348 = vst.msk [vmem:[#allocation7] sm:$0xff] %vm347, %v341
    %349 = vst.msk [vmem:[#allocation7 + $0x8] sm:$0xff] %vm347, %v344
    // Predicated region
    $region38: #{tpu_custom_call.1} parent=1 // pred_check
      _
    $region39: #{tpu_custom_call.1} parent=1 // pred_check_branch
      %351 = sbr.rel (0) target = $region41
    $region40: #{tpu_custom_call.1} parent=1 // pred_region
      %s353 = ssub.s32 256, 256
      %354 = vsyncadd [#allocation4], %s353
      %s355 = sshll.u32 [#allocation7], 4
      %s356 = int_to_ptr.vmem [resolvable:$true] %s355
      %361 = dma.vmem_to_hbm [thread:$0]  %s356, 256, %s7, [#allocation4], 128, 128, 8
    $region41: #{tpu_custom_call.1} parent=1 // pred_fallthru
      _
    // Predicated region
    $region42: #{tpu_custom_call.1} parent=1 // pred_check
      _
    $region43: #{tpu_custom_call.1} parent=1 // pred_check_branch
      %363 = sbr.rel (0) target = $region45
    $region44: #{tpu_custom_call.1} parent=1 // pred_region
      %364 = dma.done [#allocation4], 256
    $region45: #{tpu_custom_call.1} parent=1 // pred_fallthru
      _
    %365 = vsyncpa [#allocation3], 1
    %366 = vsyncpa [#allocation6], 1
    %367 = vsyncpa [#allocation4], 1

</llo_original>
